<compile_context>
chip_gen: v6e
topology: v6e:2x2x1
jax: 0.10.0
libtpu: 0.0.40
codegen_flags: <defaults>
</compile_context>

<pallas_src>
import functools

import jax
import jax.numpy as jnp
from jax.experimental import pallas as pl
from jax.experimental.pallas import tpu as pltpu


def _cdiv(a, b):
    return -(-a // b)


def node_stage1_kernel(x_ref, wc_ref, mask_ref, y_ref, stats_ref, slab_ref,
                       *, nb, wp, hr):
    """Per grid step: im2col -> fused (3x3 + 1x1) conv matmul -> BN partial sums.

    x_ref:    (nb, Cin, Hp*Wp)   bf16  aggregated+ReLU'd+padded activations
    wc_ref:   (Cout, 9*Cin)      bf16  folded conv weights
    mask_ref: (1, nb*hr)         f32   valid-column mask (junk padded columns = 0)
    y_ref:    (Cout, nb*hr)      bf16  un-normalized conv output (lane-packed over nb)
    stats_ref:(Cout, 2)          f32   per-block [sum(y), sum(y^2)] over valid columns
    slab_ref: (9*Cin, nb*hr)     bf16  VMEM scratch for the im2col slab
    """
    offs = [ky * wp + kx for ky in range(3) for kx in range(3)]

    # im2col in bf16: 9 column-shifted windows stacked along sublanes per batch
    # element, nb batch elements packed along the lane axis -> (9*Cin, nb*hr).
    for b in range(nb):
        xb = x_ref[b]                                      # (Cin, Hp*Wp) bf16
        wins = [xb[:, off:off + hr] for off in offs]       # 9 x (Cin, hr) bf16
        slab_ref[:, b * hr:(b + 1) * hr] = jnp.concatenate(wins, axis=0)

    # fused 3x3 + 1x1 conv as ONE wide MXU matmul (bf16 operands, f32 accumulate)
    y = jnp.dot(wc_ref[...], slab_ref[...],
                preferred_element_type=jnp.float32)        # (Cout, nb*hr) f32
    y_ref[...] = y.astype(y_ref.dtype)                     # bf16 intermediate to HBM

    # BN partial sums in f32 over the valid spatial columns. Zero-padded batch rows
    # are exactly zero (conv bias dropped), so they contribute nothing to the sums.
    m = mask_ref[...]                                      # (1, nb*hr)
    ym = y * m
    s1 = jnp.sum(ym, axis=1, keepdims=True)                # (Cout, 1)
    s2 = jnp.sum(ym * y, axis=1, keepdims=True)            # (Cout, 1)
    stats_ref[...] = jnp.concatenate([s1, s2], axis=1)     # (Cout, 2)


def _pick_nb(n, hr, c_in, c_out, hpwp,
             target_lanes=512, vmem_budget=24 << 20):
    """Batch elements per grid step: wide MXU lanes, v7x VMEM budget, >=2 grid steps."""
    nb = max(1, min(n, _cdiv(target_lanes, hr)))

    def vmem_bytes(k):
        return (2 * k * c_in * hpwp * 2          # x block, double buffered, bf16
                + 9 * c_in * k * hr * 2          # im2col slab scratch, bf16
                + 2 * c_out * k * hr * 2         # y block, double buffered, bf16
                + c_out * k * hr * 4             # f32 matmul accumulator
                + 9 * c_in * c_out * 2)          # packed weights, bf16

    while nb > 1 and vmem_bytes(nb) > vmem_budget:
        nb -= 1
    # keep at least 2 (balanced) grid steps when possible so v7x's 2 TCs both get work
    if n > 1:
        while nb > 1 and _cdiv(n, nb) < 2:
            nb -= 1
        nb = _cdiv(n, _cdiv(n, nb))              # rebalance (e.g. n=8, nb=7 -> nb=4)
    return max(1, nb)


def node_forward(x, aggregate_weight, w3, b3, w1, b1, gamma, beta,
                 eps=1e-5, stride=1):
    """x: (N, C, H, W, degree) float32; returns (N, Cout, H, W) float32."""
    assert stride == 1, "TODO(synk): stride > 1 not implemented"
    n, c_in, h, w, degree = x.shape
    c_out = w1.shape[0]
    wp = w + 2                    # 1 left + 1 right zero pad
    hp = h + 3                    # 1 top + 2 bottom zero pad (keeps last tap in bounds)
    hr = h * wp                   # flat padded-row output length per batch element

    # --- glue (fused by XLA): sigmoid aggregation over degree + ReLU + pad + bf16 ----
    # Contracting degree here removes the D-times-larger HBM round trip the previous
    # version paid for its transpose/pad of the degree-expanded array.
    sw = jax.nn.sigmoid(aggregate_weight.astype(jnp.float32))
    a = jnp.einsum('nchwd,d->nchw', x.astype(jnp.float32), sw)
    a = jnp.maximum(a, 0.0)
    a = jnp.pad(a, ((0, 0), (0, 0), (1, 2), (1, 1)))
    a = a.reshape(n, c_in, hp * wp).astype(jnp.bfloat16)

    nb = _pick_nb(n, hr, c_in, c_out, hp * wp)
    n_blocks = _cdiv(n, nb)
    n_pad = n_blocks * nb
    if n_pad != n:
        a = jnp.pad(a, ((0, n_pad - n), (0, 0), (0, 0)))   # zero rows: y == 0 exactly

    # --- fold the 3x3 and 1x1 convs into one packed (Cout, 9*Cin) weight -------------
    # Additive conv biases (w1 @ b3 + b1) are dropped: training-mode BatchNorm's mean
    # subtraction cancels them exactly, so the final output is unchanged.
    w1m = w1[:, :, 0, 0]                                   # (Cout, Cin)
    wc = jnp.einsum('oc,ciyx->oyxi', w1m, w3)              # (Cout, 3, 3, Cin)
    wc = wc.reshape(c_out, 9 * c_in).astype(jnp.bfloat16)

    col = jnp.arange(hr, dtype=jnp.int32) % wp
    mask = jnp.tile((col < w).astype(jnp.float32), nb).reshape(1, nb * hr)

    # --- pass 1: fused conv + per-block BN partial sums, gridded over batch blocks ---
    kern = functools.partial(node_stage1_kernel, nb=nb, wp=wp, hr=hr)
    y_blk, stats = pl.pallas_call(
        kern,
        grid=(n_blocks,),
        out_shape=(jax.ShapeDtypeStruct((n_blocks, c_out, nb * hr), jnp.bfloat16),
                   jax.ShapeDtypeStruct((n_blocks, c_out, 2), jnp.float32)),
        in_specs=[
            pl.BlockSpec((nb, c_in, hp * wp), lambda i: (i, 0, 0)),
            pl.BlockSpec((c_out, 9 * c_in), lambda i: (0, 0)),
            pl.BlockSpec((1, nb * hr), lambda i: (0, 0)),
        ],
        out_specs=(pl.BlockSpec((None, c_out, nb * hr), lambda i: (i, 0, 0)),
                   pl.BlockSpec((None, c_out, 2), lambda i: (i, 0, 0))),
        scratch_shapes=[pltpu.VMEM((9 * c_in, nb * hr), jnp.bfloat16)],
        compiler_params=pltpu.CompilerParams(
            dimension_semantics=("parallel",),
            vmem_limit_bytes=48 * 1024 * 1024),
    )(a, wc, mask)

    # --- tiny f32 BN reduction over blocks (count uses the real batch only) ----------
    s1 = jnp.sum(stats[:, :, 0], axis=0)                   # (Cout,)
    s2 = jnp.sum(stats[:, :, 1], axis=0)                   # (Cout,)
    count = float(n * h * w)
    mean = s1 / count
    # TODO(synk): E[y^2] - mean^2 can lose precision if |mean| >> std; fine here.
    var = s2 / count - mean * mean
    scale = gamma * jax.lax.rsqrt(var + eps)
    shift = beta - mean * scale

    # --- BN affine fused (by XLA) with the junk-column slice and layout fix ----------
    y = y_blk.reshape(n_blocks, c_out, nb, h, wp)[..., :w].astype(jnp.float32)
    y = y * scale[None, :, None, None, None] + shift[None, :, None, None, None]
    y = jnp.transpose(y, (0, 2, 1, 3, 4)).reshape(n_pad, c_out, h, w)
    return y[:n]


def node_reference(x, aggregate_weight, w3, b3, w1, b1, gamma, beta, eps=1e-5):
    """Pure-JAX reference of the PyTorch forward (training-mode BN)."""
    sw = jax.nn.sigmoid(aggregate_weight)
    y = jnp.einsum('nchwd,d->nchw', x, sw)
    y = jnp.maximum(y, 0.0)
    y = jax.lax.conv_general_dilated(y, w3, (1, 1), ((1, 1), (1, 1)),
                                     dimension_numbers=('NCHW', 'OIHW', 'NCHW'))
    y = y + b3[None, :, None, None]
    y = jax.lax.conv_general_dilated(y, w1, (1, 1), 'VALID',
                                     dimension_numbers=('NCHW', 'OIHW', 'NCHW'))
    y = y + b1[None, :, None, None]
    mean = jnp.mean(y, axis=(0, 2, 3), keepdims=True)
    var = jnp.var(y, axis=(0, 2, 3), keepdims=True)
    y = (y - mean) * jax.lax.rsqrt(var + eps)
    return y * gamma[None, :, None, None] + beta[None, :, None, None]


if __name__ == "__main__":
    key = jax.random.PRNGKey(0)
    ks = jax.random.split(key, 8)
    N, Cin, Cout, H, W, DEG = 2, 8, 16, 8, 8, 2

    x = jax.random.normal(ks[0], (N, Cin, H, W, DEG), jnp.float32)
    # module initializes aggregate_weight to zeros; random values exercise the
    # sigmoid/aggregation path
    aggw = 0.5 * jax.random.normal(ks[1], (DEG,), jnp.float32)
    w3 = 0.1 * jax.random.normal(ks[2], (Cin, Cin, 3, 3), jnp.float32)
    b3 = 0.1 * jax.random.normal(ks[3], (Cin,), jnp.float32)
    w1 = 0.1 * jax.random.normal(ks[4], (Cout, Cin, 1, 1), jnp.float32)
    b1 = 0.1 * jax.random.normal(ks[5], (Cout,), jnp.float32)
    gamma = 1.0 + 0.1 * jax.random.normal(ks[6], (Cout,), jnp.float32)
    beta = 0.1 * jax.random.normal(ks[7], (Cout,), jnp.float32)

    fwd = jax.jit(node_forward)
    out = fwd(x, aggw, w3, b3, w1, b1, gamma, beta)
    out = jax.block_until_ready(out)

    ref = node_reference(x, aggw, w3, b3, w1, b1, gamma, beta)
    assert out.shape == (N, Cout, H, W), out.shape
    # bf16 MXU operands and a bf16-stored intermediate -> bf16-appropriate tolerance
    assert jnp.allclose(out, ref, atol=3e-2, rtol=3e-2), \
        float(jnp.max(jnp.abs(out - ref)))
    print("KERNEL_OK")
</pallas_src>

<mosaic_0001>
module attributes {stable_mosaic.version = 11 : i64} {
  func.func @node_stage1_kernel(%arg0: i32, %arg1: memref<1x8x110xbf16, #tpu.memory_space<vmem>>, %arg2: memref<16x72xbf16, #tpu.memory_space<vmem>>, %arg3: memref<1x80xf32, #tpu.memory_space<vmem>>, %arg4: memref<1x16x80xbf16, #tpu.memory_space<vmem>>, %arg5: memref<1x16x2xf32, #tpu.memory_space<vmem>>, %arg6: memref<72x80xbf16, #tpu.memory_space<vmem>>) attributes {dimension_semantics = [#tpu.dimension_semantics<parallel>], iteration_bounds = array<i64: 2>, scalar_prefetch = 0 : i64, scratch_operands = 1 : i64, tpu.core_type = #tpu.core_type<tc>, window_params = [{transform_indices = @transform_0, window_bounds = array<i64: 1, 8, 110>}, {pipeline_mode = #tpu.pipeline_mode<synchronous>, transform_indices = @transform_1, window_bounds = array<i64: 16, 72>}, {pipeline_mode = #tpu.pipeline_mode<synchronous>, transform_indices = @transform_2, window_bounds = array<i64: 1, 80>}, {transform_indices = @transform_3, window_bounds = array<i64: 1, 16, 80>}, {transform_indices = @transform_4, window_bounds = array<i64: 1, 16, 2>}]} {
    %c0 = arith.constant 0 : index
    %c0_0 = arith.constant 0 : index
    %c0_1 = arith.constant 0 : index
    %0 = vector.load %arg1[%c0, %c0_0, %c0_1] : memref<1x8x110xbf16, #tpu.memory_space<vmem>>, vector<1x8x110xbf16>
    %1 = vector.shape_cast %0 : vector<1x8x110xbf16> to vector<8x110xbf16>
    %2 = vector.extract_strided_slice %1 {offsets = [0, 0], sizes = [8, 80], strides = [1, 1]} : vector<8x110xbf16> to vector<8x80xbf16>
    %3 = vector.extract_strided_slice %1 {offsets = [0, 1], sizes = [8, 80], strides = [1, 1]} : vector<8x110xbf16> to vector<8x80xbf16>
    %4 = vector.extract_strided_slice %1 {offsets = [0, 2], sizes = [8, 80], strides = [1, 1]} : vector<8x110xbf16> to vector<8x80xbf16>
    %5 = vector.extract_strided_slice %1 {offsets = [0, 10], sizes = [8, 80], strides = [1, 1]} : vector<8x110xbf16> to vector<8x80xbf16>
    %6 = vector.extract_strided_slice %1 {offsets = [0, 11], sizes = [8, 80], strides = [1, 1]} : vector<8x110xbf16> to vector<8x80xbf16>
    %7 = vector.extract_strided_slice %1 {offsets = [0, 12], sizes = [8, 80], strides = [1, 1]} : vector<8x110xbf16> to vector<8x80xbf16>
    %8 = vector.extract_strided_slice %1 {offsets = [0, 20], sizes = [8, 80], strides = [1, 1]} : vector<8x110xbf16> to vector<8x80xbf16>
    %9 = vector.extract_strided_slice %1 {offsets = [0, 21], sizes = [8, 80], strides = [1, 1]} : vector<8x110xbf16> to vector<8x80xbf16>
    %10 = vector.extract_strided_slice %1 {offsets = [0, 22], sizes = [8, 80], strides = [1, 1]} : vector<8x110xbf16> to vector<8x80xbf16>
    %11 = tpu.concatenate %2, %3, %4, %5, %6, %7, %8, %9, %10 in 0 : vector<8x80xbf16>, vector<8x80xbf16>, vector<8x80xbf16>, vector<8x80xbf16>, vector<8x80xbf16>, vector<8x80xbf16>, vector<8x80xbf16>, vector<8x80xbf16>, vector<8x80xbf16> -> vector<72x80xbf16>
    %c0_2 = arith.constant 0 : index
    %c0_3 = arith.constant 0 : index
    %12 = vector.load %arg6[%c0_2, %c0_3] : memref<72x80xbf16, #tpu.memory_space<vmem>>, vector<72x80xbf16>
    tpu.vector_store %arg6[%c0_2, %c0_3], %11 {strides = array<i32>} : memref<72x80xbf16, #tpu.memory_space<vmem>>, vector<72x80xbf16>,
    %c0_4 = arith.constant 0 : index
    %c0_5 = arith.constant 0 : index
    %13 = vector.load %arg2[%c0_4, %c0_5] : memref<16x72xbf16, #tpu.memory_space<vmem>>, vector<16x72xbf16>
    %c0_6 = arith.constant 0 : index
    %c0_7 = arith.constant 0 : index
    %14 = vector.load %arg6[%c0_6, %c0_7] : memref<72x80xbf16, #tpu.memory_space<vmem>>, vector<72x80xbf16>
    %cst = arith.constant dense<0.000000e+00> : vector<16x80xf32>
    %15 = tpu.matmul %13, %14, %cst {dimension_numbers = #tpu.dot_dimension_numbers<[1], [0], [0], [1], [0, 0, 1, 1], [], []>} : vector<16x72xbf16>, vector<72x80xbf16>, vector<16x80xf32> -> vector<16x80xf32>
    %16 = arith.truncf %15 : vector<16x80xf32> to vector<16x80xbf16>
    %c0_8 = arith.constant 0 : index
    %c0_9 = arith.constant 0 : index
    %c0_10 = arith.constant 0 : index
    %17 = vector.load %arg4[%c0_8, %c0_9, %c0_10] : memref<1x16x80xbf16, #tpu.memory_space<vmem>>, vector<1x16x80xbf16>
    %18 = vector.shape_cast %17 : vector<1x16x80xbf16> to vector<16x80xbf16>
    %19 = vector.shape_cast %16 : vector<16x80xbf16> to vector<1x16x80xbf16>
    tpu.vector_store %arg4[%c0_8, %c0_9, %c0_10], %19 {strides = array<i32>} : memref<1x16x80xbf16, #tpu.memory_space<vmem>>, vector<1x16x80xbf16>,
    %c0_11 = arith.constant 0 : index
    %c0_12 = arith.constant 0 : index
    %20 = vector.load %arg3[%c0_11, %c0_12] : memref<1x80xf32, #tpu.memory_space<vmem>>, vector<1x80xf32>
    %21 = vector.broadcast %20 : vector<1x80xf32> to vector<16x80xf32>
    %22 = arith.mulf %15, %21 : vector<16x80xf32>
    %cst_13 = arith.constant dense<0.000000e+00> : vector<16xf32>
    %23 = vector.multi_reduction <add>, %22, %cst_13 [1] : vector<16x80xf32> to vector<16xf32>
    %24 = vector.shape_cast %23 : vector<16xf32> to vector<16x1xf32>
    %25 = arith.mulf %22, %15 : vector<16x80xf32>
    %cst_14 = arith.constant dense<0.000000e+00> : vector<16xf32>
    %26 = vector.multi_reduction <add>, %25, %cst_14 [1] : vector<16x80xf32> to vector<16xf32>
    %27 = vector.shape_cast %26 : vector<16xf32> to vector<16x1xf32>
    %28 = tpu.concatenate %24, %27 in 1 : vector<16x1xf32>, vector<16x1xf32> -> vector<16x2xf32>
    %c0_15 = arith.constant 0 : index
    %c0_16 = arith.constant 0 : index
    %c0_17 = arith.constant 0 : index
    %29 = vector.load %arg5[%c0_15, %c0_16, %c0_17] : memref<1x16x2xf32, #tpu.memory_space<vmem>>, vector<1x16x2xf32>
    %30 = vector.shape_cast %29 : vector<1x16x2xf32> to vector<16x2xf32>
    %31 = vector.shape_cast %28 : vector<16x2xf32> to vector<1x16x2xf32>
    tpu.vector_store %arg5[%c0_15, %c0_16, %c0_17], %31 {strides = array<i32>} : memref<1x16x2xf32, #tpu.memory_space<vmem>>, vector<1x16x2xf32>,
    return
  }
  func.func @transform_0(%arg0: i32) -> (i32, i32, i32) {
    %c0_i32 = arith.constant 0 : i32
    %c0_i32_0 = arith.constant 0 : i32
    %c0_i32_1 = arith.constant 0 : i32
    return %arg0, %c0_i32, %c0_i32_0 : i32, i32, i32
  }
  func.func @transform_1(%arg0: i32) -> (i32, i32) {
    %c0_i32 = arith.constant 0 : i32
    %c0_i32_0 = arith.constant 0 : i32
    %c0_i32_1 = arith.constant 0 : i32
    return %c0_i32, %c0_i32_0 : i32, i32
  }
  func.func @transform_2(%arg0: i32) -> (i32, i32) {
    %c0_i32 = arith.constant 0 : i32
    %c0_i32_0 = arith.constant 0 : i32
    %c0_i32_1 = arith.constant 0 : i32
    return %c0_i32, %c0_i32_0 : i32, i32
  }
  func.func @transform_3(%arg0: i32) -> (i32, i32, i32) {
    %c0_i32 = arith.constant 0 : i32
    %c0_i32_0 = arith.constant 0 : i32
    %c0_i32_1 = arith.constant 0 : i32
    return %arg0, %c0_i32, %c0_i32_0 : i32, i32, i32
  }
  func.func @transform_4(%arg0: i32) -> (i32, i32, i32) {
    %c0_i32 = arith.constant 0 : i32
    %c0_i32_0 = arith.constant 0 : i32
    %c0_i32_1 = arith.constant 0 : i32
    return %arg0, %c0_i32, %c0_i32_0 : i32, i32, i32
  }
}

</mosaic_0001>

<llo_original>
// kernel: node_forward.1
$region0: #{node_forward.1}
  #allocation0 [shape = 'u32[]', space=smem, size = 0x4, offset = 0x4, fixed_abs, tag = 'smem constant byte address 0x4 - core index']
  #allocation1 [shape = 'u32[144,128]{1,0:T(1,128)}', space=vmem, size = 0x12000, scoped, tag = 'internal scratch']
  #allocation2 [shape = 'bf16[72,80]{1,0:T(8,128)(2,1)}', space=vmem, size = 0x4800, scoped, tag = 'scratch operand']
  %s0 = inlined_call_operand.vmem [shape: bf16[2,8,110], index: 0, kind: input, shape index: {}]
  %s1 = inlined_call_operand.vmem [shape: bf16[16,72], index: 1, kind: input, shape index: {}]
  %s2 = inlined_call_operand.vmem [shape: f32[1,80], index: 2, kind: input, shape index: {}]
  %s3 = inlined_call_operand.vmem [shape: bf16[2,16,80], index: 3, kind: output, shape index: {0}]
  %s4 = inlined_call_operand.vmem [shape: f32[2,16,2], index: 4, kind: output, shape index: {1}]
  %5 = xla_tuple %s3, %s4
  %s6 = sld [smem:[#allocation0]]
  $region53: #{node_forward.1} parent=0
    _
  %s8 = ssub.s32 1, %s6
  %s9 = scalar_select 0, %s8, %s6
  loop: start=0, step=1, limit=4
  $region2: #{node_forward.1} parent=0 // loop_pre_header
    _
  $region3: #{node_forward.1} parent=0 // loop_header
    %s11 = sphi 0, %s15
    %p12 = scmp.ge.s32.totalorder %s11, 4
    %s21 = sphi 0, %s23
    %s24 = sphi 0, %s21
    %s25 = sphi 0, %s24
    %s41 = sphi 0, %s25
    %s45 = sphi 0, %s45
    %s47 = sphi 0, %s45
    %s48 = sphi 0, %s47
    %s62 = sphi 0, %s48
    %s66 = sphi 0, %s66
    %s68 = sphi 0, %s66
    %s69 = sphi 0, %s68
    %s83 = sphi 0, %s69
    %s89 = sphi 0, %s91
    %s92 = sphi 0, %s89
    %s93 = sphi 0, %s92
    %s109 = sphi 0, %s93
    %s115 = sphi 0, %s117
    %s118 = sphi 0, %s115
    %s119 = sphi 0, %s118
    %s135 = sphi 0, %s119
  $region4: #{node_forward.1} parent=0 // loop_header_branch
    %14 = sbr.rel (%p12) target = $region8
  $region5: #{node_forward.1} parent=0 // loop_body
    %s16 = ssub.s32 %s11, 1
    %s17 = ssub.s32 %s11, 2
    %s18 = sadd.s32 %s11, 1
    %s19 = ssub.s32 %s11, %s18
    %p20 = scmp.eq.s32.totalorder %s19, 0
    %s22 = sadd.s32 %s21, 1
    %s23 = scalar_select %p20, %s21, %s22
    %p26 = pneg %p20
    %p27 = scmp.eq.s32.totalorder %s11, 1
    %p28 = por %p26, %p27
    %p29 = scmp.ne.s32.totalorder %s21, %s24
    %p30 = scmp.eq.s32.totalorder %s11, 0
    %p31 = por %p29, %p30
    %p32 = scmp.ne.s32.totalorder %s21, %s24
    %p33 = scmp.eq.s32.totalorder %s16, 1
    %p34 = por %p32, %p33
    %p35 = scmp.ne.s32.totalorder %s24, %s25
    %p36 = scmp.eq.s32.totalorder %s16, 0
    %p37 = por %p35, %p36
    %p38 = scmp.ne.s32.totalorder %s24, %s25
    %p39 = scmp.eq.s32.totalorder %s17, 1
    %p40 = por %p38, %p39
    %p42 = scmp.ne.s32.totalorder %s25, %s41
    %p43 = scmp.eq.s32.totalorder %s17, 0
    %p44 = por %p42, %p43
    %s46 = sadd.s32 %s45, 1
    %p49 = scmp.eq.s32.totalorder %s11, 1
    %p50 = scmp.ne.s32.totalorder %s45, %s47
    %p51 = scmp.eq.s32.totalorder %s11, 0
    %p52 = por %p50, %p51
    %p53 = scmp.ne.s32.totalorder %s45, %s47
    %p54 = scmp.eq.s32.totalorder %s16, 1
    %p55 = por %p53, %p54
    %p56 = scmp.ne.s32.totalorder %s47, %s48
    %p57 = scmp.eq.s32.totalorder %s16, 0
    %p58 = por %p56, %p57
    %p59 = scmp.ne.s32.totalorder %s47, %s48
    %p60 = scmp.eq.s32.totalorder %s17, 1
    %p61 = por %p59, %p60
    %p63 = scmp.ne.s32.totalorder %s48, %s62
    %p64 = scmp.eq.s32.totalorder %s17, 0
    %p65 = por %p63, %p64
    %s67 = sadd.s32 %s66, 1
    %p70 = scmp.eq.s32.totalorder %s11, 1
    %p71 = scmp.ne.s32.totalorder %s66, %s68
    %p72 = scmp.eq.s32.totalorder %s11, 0
    %p73 = por %p71, %p72
    %p74 = scmp.ne.s32.totalorder %s66, %s68
    %p75 = scmp.eq.s32.totalorder %s16, 1
    %p76 = por %p74, %p75
    %p77 = scmp.ne.s32.totalorder %s68, %s69
    %p78 = scmp.eq.s32.totalorder %s16, 0
    %p79 = por %p77, %p78
    %p80 = scmp.ne.s32.totalorder %s68, %s69
    %p81 = scmp.eq.s32.totalorder %s17, 1
    %p82 = por %p80, %p81
    %p84 = scmp.ne.s32.totalorder %s69, %s83
    %p85 = scmp.eq.s32.totalorder %s17, 0
    %p86 = por %p84, %p85
    %s87 = ssub.s32 %s11, %s18
    %p88 = scmp.eq.s32.totalorder %s87, 0
    %s90 = sadd.s32 %s89, 1
    %s91 = scalar_select %p88, %s89, %s90
    %p94 = pneg %p88
    %p95 = scmp.eq.s32.totalorder %s11, 1
    %p96 = por %p94, %p95
    %p97 = scmp.ne.s32.totalorder %s89, %s92
    %p98 = scmp.eq.s32.totalorder %s11, 0
    %p99 = por %p97, %p98
    %p100 = scmp.ne.s32.totalorder %s89, %s92
    %p101 = scmp.eq.s32.totalorder %s16, 1
    %p102 = por %p100, %p101
    %p103 = scmp.ne.s32.totalorder %s92, %s93
    %p104 = scmp.eq.s32.totalorder %s16, 0
    %p105 = por %p103, %p104
    %p106 = scmp.ne.s32.totalorder %s92, %s93
    %p107 = scmp.eq.s32.totalorder %s17, 1
    %p108 = por %p106, %p107
    %p110 = scmp.ne.s32.totalorder %s93, %s109
    %p111 = scmp.eq.s32.totalorder %s17, 0
    %p112 = por %p110, %p111
    %s113 = ssub.s32 %s11, %s18
    %p114 = scmp.eq.s32.totalorder %s113, 0
    %s116 = sadd.s32 %s115, 1
    %s117 = scalar_select %p114, %s115, %s116
    %p120 = pneg %p114
    %p121 = scmp.eq.s32.totalorder %s11, 1
    %p122 = por %p120, %p121
    %p123 = scmp.ne.s32.totalorder %s115, %s118
    %p124 = scmp.eq.s32.totalorder %s11, 0
    %p125 = por %p123, %p124
    %p126 = scmp.ne.s32.totalorder %s115, %s118
    %p127 = scmp.eq.s32.totalorder %s16, 1
    %p128 = por %p126, %p127
    %p129 = scmp.ne.s32.totalorder %s118, %s119
    %p130 = scmp.eq.s32.totalorder %s16, 0
    %p131 = por %p129, %p130
    %p132 = scmp.ne.s32.totalorder %s118, %s119
    %p133 = scmp.eq.s32.totalorder %s17, 1
    %p134 = por %p132, %p133
    %p136 = scmp.ne.s32.totalorder %s119, %s135
    %p137 = scmp.eq.s32.totalorder %s17, 0
    %p138 = por %p136, %p137
    %p139 = scmp.le.s32.totalorder 1, %s11
    %p140 = scmp.lt.s32.totalorder %s11, 3
    %p141 = pnand %p139, %p140
    %p142 = pneg %p141
    // Predicated region
    $region9: #{node_forward.1} parent=5 // pred_check
      _
    $region10: #{node_forward.1} parent=5 // pred_check_branch
      %144 = sbr.rel (%p141) target = $region12
    $region11: #{node_forward.1} parent=5 // pred_region
      %s145 = ssub.s32 %s11, 1
      // Predicated region
      $region13: #{node_forward.1} parent=11 // pred_check
        %p146 = pneg %p58
      $region14: #{node_forward.1} parent=11 // pred_check_branch
        %148 = sbr.rel (%p146) target = $region16
      $region15: #{node_forward.1} parent=11 // pred_region
        _
      $region16: #{node_forward.1} parent=11 // pred_fallthru
        _
      // Predicated region
      $region17: #{node_forward.1} parent=11 // pred_check
        %p149 = pneg %p79
      $region18: #{node_forward.1} parent=11 // pred_check_branch
        %151 = sbr.rel (%p149) target = $region20
      $region19: #{node_forward.1} parent=11 // pred_region
        _
      $region20: #{node_forward.1} parent=11 // pred_fallthru
        _
    $region12: #{node_forward.1} parent=5 // pred_fallthru
      _
    %p152 = scmp.lt.s32.totalorder %s11, 2
    // Predicated region
    $region21: #{node_forward.1} parent=5 // pred_check
      %p153 = pneg %p152
    $region22: #{node_forward.1} parent=5 // pred_check_branch
      %155 = sbr.rel (%p153) target = $region24
    $region23: #{node_forward.1} parent=5 // pred_region
      // Predicated region
      $region25: #{node_forward.1} parent=23 // pred_check
        %p156 = pneg %p31
      $region26: #{node_forward.1} parent=23 // pred_check_branch
        %158 = sbr.rel (%p156) target = $region28
      $region27: #{node_forward.1} parent=23 // pred_region
        %p159 = scmp.lt.s32.totalorder %s11, 1
        %s160 = scalar_select %p159, %s11, 1
        %s161 = smul.addr %s160, 4
        %s162 = scalar_lea.vmem %s0, %s161
      $region28: #{node_forward.1} parent=23 // pred_fallthru
        _
    $region24: #{node_forward.1} parent=5 // pred_fallthru
      _
    %p163 = scmp.le.s32.totalorder 1, %s11
    %p164 = scmp.lt.s32.totalorder %s11, 3
    %p165 = pnand %p163, %p164
    %p166 = pneg %p165
    // Predicated region
    $region29: #{node_forward.1} parent=5 // pred_check
      _
    $region30: #{node_forward.1} parent=5 // pred_check_branch
      %168 = sbr.rel (%p165) target = $region32
    $region31: #{node_forward.1} parent=5 // pred_region
      %s169 = ssub.s32 %s11, 1
      %p170 = scmp.lt.s32.totalorder %s16, 1
      %s171 = scalar_select %p170, %s16, 1
      %s172 = smul.addr %s171, 4
      %s173 = scalar_lea.vmem %s0, %s172
      %p174 = pneg %p37
      %p175 = pneg %p34
      %p176 = pneg %p58
      %p177 = pneg %p55
      %p178 = pneg %p79
      %p179 = pneg %p76
      %p180 = pneg %p105
      %p181 = pneg %p102
      %p182 = scmp.lt.s32.totalorder %s16, 1
      %s183 = scalar_select %p182, %s16, 1
      %s184 = smul.addr %s183, 2
      %s185 = smul.addr %s184, 4
      %s186 = scalar_lea.vmem %s3, %s185
      %p187 = pneg %p131
      %p188 = pneg %p128
      %p189 = scmp.lt.s32.totalorder %s16, 1
      %s190 = scalar_select %p189, %s16, 1
      %s191 = smul.addr %s190, 2
      %s192 = smul.addr %s191, 8
      %s193 = scalar_lea.vmem %s4, %s192
      %p194 = scmp.lt.s32.totalorder %s16, 1
      %s195 = scalar_select %p194, %s16, 1
      %s196 = smul.addr %s195, 4
      %s197 = scalar_lea.vmem %s0, %s196
      %p198 = scmp.lt.s32.totalorder %s16, 1
      %s199 = scalar_select %p198, %s16, 1
      %s200 = smul.addr %s199, 2
      %s201 = smul.addr %s200, 4
      %s202 = scalar_lea.vmem %s3, %s201
      %p203 = scmp.lt.s32.totalorder %s16, 1
      %s204 = scalar_select %p203, %s16, 1
      %s205 = smul.addr %s204, 2
      %s206 = smul.addr %s205, 8
      %s207 = scalar_lea.vmem %s4, %s206
      %v209 = vld [vmem:[%s197] sm:$0xf]
      %v211 = vunpack.c.l.b16 %v209
      %v212 = vpack.c.b16 %v211, %v211
      %213 = vrot.lane.b32.xlu0 %v212, 127
      %v214 = vpop.permute.xlu0 %213
      %215 = vrot.lane.b32.xlu0 %v212, 126
      %v216 = vpop.permute.xlu0 %215
      %217 = vrot.lane.b32.xlu0 %v212, 118
      %v218 = vpop.permute.xlu0 %217
      %219 = vrot.lane.b32.xlu0 %v212, 117
      %v220 = vpop.permute.xlu0 %219
      %221 = vrot.lane.b32.xlu0 %v212, 116
      %v222 = vpop.permute.xlu0 %221
      %223 = vrot.lane.b32.xlu0 %v212, 108
      %v224 = vpop.permute.xlu0 %223
      %225 = vrot.lane.b32.xlu0 %v212, 107
      %v226 = vpop.permute.xlu0 %225
      %227 = vrot.lane.b32.xlu0 %v212, 106
      %v228 = vpop.permute.xlu0 %227
      %vm229 = vcmask 1043456
      %v232 = vsel %vm229, %v209, %v214
      %v235 = vsel %vm229, %v216, %v218
      %v238 = vsel %vm229, %v220, %v222
      %v241 = vsel %vm229, %v224, %v226
      %v246 = vunpack.c.l.b16 %v232
      %v247 = vunpack.c.h.b16 %v232
      %v248 = vunpack.c.l.b16 %v235
      %v249 = vunpack.c.h.b16 %v235
      %v250 = vunpack.c.l.b16 %v238
      %v251 = vunpack.c.h.b16 %v238
      %v252 = vunpack.c.l.b16 %v241
      %v253 = vunpack.c.h.b16 %v241
      %v254 = vunpack.c.l.b16 %v228
      %v255 = vpack.c.b16 %v246, %v246
      %v256 = vpack.c.b16 %v247, %v247
      %v257 = vpack.c.b16 %v248, %v248
      %v258 = vpack.c.b16 %v249, %v249
      %v259 = vpack.c.b16 %v250, %v250
      %v260 = vpack.c.b16 %v251, %v251
      %v261 = vpack.c.b16 %v252, %v252
      %v262 = vpack.c.b16 %v253, %v253
      %v263 = vpack.c.b16 %v254, %v254
      %vm273 = vcmask 650240
      %274 = vst.msk [vmem:[#allocation2] sm:$0xf] %vm273, %v255
      %275 = vst.msk [vmem:[#allocation2 + $0x4] sm:$0xf] %vm273, %v256
      %276 = vst.msk [vmem:[#allocation2 + $0x8] sm:$0xf] %vm273, %v257
      %277 = vst.msk [vmem:[#allocation2 + $0xc] sm:$0xf] %vm273, %v258
      %278 = vst.msk [vmem:[#allocation2 + $0x10] sm:$0xf] %vm273, %v259
      %279 = vst.msk [vmem:[#allocation2 + $0x14] sm:$0xf] %vm273, %v260
      %280 = vst.msk [vmem:[#allocation2 + $0x18] sm:$0xf] %vm273, %v261
      %281 = vst.msk [vmem:[#allocation2 + $0x1c] sm:$0xf] %vm273, %v262
      %282 = vst.msk [vmem:[#allocation2 + $0x20] sm:$0xf] %vm273, %v263
      %v283 = vld [vmem:[%s1] sm:$0xf]
      %v284 = vld [vmem:[%s1 + $0x4] sm:$0xf]
      %v285 = vld [vmem:[#allocation2] sm:$0xf]
      %v286 = vld [vmem:[#allocation2 + $0x4] sm:$0xf]
      %v287 = vld [vmem:[#allocation2 + $0x8] sm:$0xf]
      %v288 = vld [vmem:[#allocation2 + $0xc] sm:$0xf]
      %v289 = vld [vmem:[#allocation2 + $0x10] sm:$0xf]
      %v290 = vld [vmem:[#allocation2 + $0x14] sm:$0xf]
      %v291 = vld [vmem:[#allocation2 + $0x18] sm:$0xf]
      %v292 = vld [vmem:[#allocation2 + $0x1c] sm:$0xf]
      %v293 = vld [vmem:[#allocation2 + $0x20] sm:$0xf]
      %v296 = vunpack.c.l.b16 %v283
      %v297 = vunpack.c.l.b16 %v284
      %v298 = vpack.c.b16 %v297, %v296
      %v308 = vunpack.c.l.b16 %v285
      %v309 = vunpack.c.l.b16 %v286
      %v310 = vunpack.c.l.b16 %v287
      %v311 = vunpack.c.l.b16 %v288
      %v312 = vunpack.c.l.b16 %v289
      %v313 = vunpack.c.l.b16 %v290
      %v314 = vunpack.c.l.b16 %v291
      %v315 = vunpack.c.l.b16 %v292
      %v316 = vunpack.c.l.b16 %v293
      %v317 = vpack.c.b16 %v309, %v308
      %v318 = vpack.c.b16 %v311, %v310
      %v319 = vpack.c.b16 %v313, %v312
      %v320 = vpack.c.b16 %v315, %v314
      %v321 = vpack.c.b16 %v316, %v316
      %vm326 = vcmask 588800
      %v328 = vsel %vm326, %v298, 0
      %v331 = vsel %vm229, %v321, 0
      %333 = vmatprep.subr.bf16.mxu0 0
      %334 = vmatpush1.bf16.msra.mxu0 0
      %335 = vmatprep.subr.bf16.mxu0 0
      %336 = vmatpush1.bf16.msra.mxu0 0
      %337 = vmatprep.subr.bf16.mxu0 0
      %338 = vmatpush1.bf16.msra.mxu0 0
      %339 = vmatprep.subr.bf16.mxu0 0
      %340 = vmatpush1.bf16.msra.mxu0 %v331
      %341 = vmatprep.subr.bf16.mxu0 0
      %342 = vmatpush1.bf16.msra.mxu0 %v320
      %343 = vmatprep.subr.bf16.mxu0 0
      %344 = vmatpush1.bf16.msra.mxu0 %v319
      %345 = vmatprep.subr.bf16.mxu0 0
      %346 = vmatpush1.bf16.msra.mxu0 %v318
      %347 = vmatprep.subr.bf16.mxu0 0
      %348 = vmatpush1.bf16.msra.mxu0 %v317
      %349 = vmatprep.subr.bf16.mxu0 0
      %350 = vmatpush2.bf16.msra.mxu0 0
      %351 = vmatprep.subr.bf16.mxu0 0
      %352 = vmatpush2.bf16.msra.mxu0 0
      %353 = vmatprep.subr.bf16.mxu0 0
      %354 = vmatpush2.bf16.msra.mxu0 0
      %355 = vmatprep.subr.bf16.mxu0 0
      %356 = vmatpush2.bf16.msra.mxu0 0
      %357 = vmatprep.subr.bf16.mxu0 0
      %358 = vmatpush2.bf16.msra.mxu0 0
      %359 = vmatprep.subr.bf16.mxu0 0
      %360 = vmatpush2.bf16.msra.mxu0 0
      %361 = vmatprep.subr.bf16.mxu0 0
      %362 = vmatpush2.bf16.msra.mxu0 0
      %363 = vmatprep.subr.bf16.mxu0 0
      %364 = vmatpush2.bf16.msra.mxu0 0
      %365 = vmatprep.mubr.bf16.mxu0 0
      %366 = vmatmul.mubr.bf16.gmra.mxu0 %v328
      %v367 = vpop.f32.mrf.mxu0
      %v368 = vadd.f32 0.0, %v367
      %v369 = vpop.f32.mrf.mxu0
      %v370 = vpop.f32.mrf.mxu0
      %v371 = vadd.f32 0.0, %v370
      %v372 = vpop.f32.mrf.mxu0
      %373 = vdwg.mxu0
      %v374 = vpack.c.bf16 %v371, %v368
      %v376 = vunpack.c.l.b16 %v374
      %v377 = vunpack.c.h.b16 %v374
      %v378 = vpack.c.b16 %v376, %v376
      %v379 = vpack.c.b16 %v377, %v377
      %382 = vst.msk [vmem:[%s202] sm:$0xf] %vm273, %v378
      %383 = vst.msk [vmem:[%s202 + $0x4] sm:$0xf] %vm273, %v379
      %v384 = vld [vmem:[%s2] sm:$0x1]
      %v386 = vlaneseq
      %v387 = vshrl.u32 %v386, 7
      %v388 = vsub.s32 0, %v387
      %v389 = vrot.slane %v384, %v388
      %v391 = vmul.f32 %v368, %v389
      %v392 = vmul.f32 %v371, %v389
      %vm393 = vcmask 654336
      %v394 = vsel %vm393, %v391, 0.0
      %395 = vadd.xlane.f32.xlu0 %v394
      %v396 = vpop.xlane.xlu0 %395
      %v397 = vsel %vm393, %v392, 0.0
      %398 = vadd.xlane.f32.xlu0 %v397
      %v399 = vpop.xlane.xlu0 %398
      %v400 = vmul.f32 %v391, %v368
      %v401 = vmul.f32 %v392, %v371
      %v402 = vsel %vm393, %v400, 0.0
      %403 = vadd.xlane.f32.xlu0 %v402
      %v404 = vpop.xlane.xlu0 %403
      %v405 = vsel %vm393, %v401, 0.0
      %406 = vadd.xlane.f32.xlu0 %v405
      %v407 = vpop.xlane.xlu0 %406
      %vm408 = vcmask 7168
      %v409 = vsel %vm408, %v396, %v404
      %v410 = vsel %vm408, %v399, %v407
      %vm411 = vcmask 15360
      %412 = vst.msk [vmem:[%s207] sm:$0xff] %vm411, %v409
      %413 = vst.msk [vmem:[%s207 + $0x8] sm:$0xff] %vm411, %v410
      %p414 = scmp.lt.s32.totalorder %s16, 1
      %s415 = scalar_select %p414, %s16, 1
      %s416 = smul.addr %s415, 2
      %s417 = smul.addr %s416, 4
      %s418 = scalar_lea.vmem %s3, %s417
      %p419 = scmp.lt.s32.totalorder %s16, 1
      %s420 = scalar_select %p419, %s16, 1
      %s421 = smul.addr %s420, 2
      %s422 = smul.addr %s421, 8
      %s423 = scalar_lea.vmem %s4, %s422
      // Predicated region
      $region33: #{node_forward.1} parent=31 // pred_check
        %p424 = pneg %p102
      $region34: #{node_forward.1} parent=31 // pred_check_branch
        %426 = sbr.rel (%p424) target = $region36
      $region35: #{node_forward.1} parent=31 // pred_region
        _
      $region36: #{node_forward.1} parent=31 // pred_fallthru
        _
      // Predicated region
      $region37: #{node_forward.1} parent=31 // pred_check
        %p427 = pneg %p128
      $region38: #{node_forward.1} parent=31 // pred_check_branch
        %429 = sbr.rel (%p427) target = $region40
      $region39: #{node_forward.1} parent=31 // pred_region
        _
      $region40: #{node_forward.1} parent=31 // pred_fallthru
        _
    $region32: #{node_forward.1} parent=5 // pred_fallthru
      _
    %p430 = scmp.le.s32.totalorder 2, %s11
    // Predicated region
    $region41: #{node_forward.1} parent=5 // pred_check
      %p431 = pneg %p430
    $region42: #{node_forward.1} parent=5 // pred_check_branch
      %433 = sbr.rel (%p431) target = $region44
    $region43: #{node_forward.1} parent=5 // pred_region
      %s434 = ssub.s32 %s11, 2
      // Predicated region
      $region45: #{node_forward.1} parent=43 // pred_check
        %p435 = pneg %p108
      $region46: #{node_forward.1} parent=43 // pred_check_branch
        %437 = sbr.rel (%p435) target = $region48
      $region47: #{node_forward.1} parent=43 // pred_region
        %p438 = scmp.lt.s32.totalorder %s17, 1
        %s439 = scalar_select %p438, %s17, 1
        %s440 = smul.addr %s439, 2
        %s441 = smul.addr %s440, 4
        %s442 = scalar_lea.vmem %s3, %s441
      $region48: #{node_forward.1} parent=43 // pred_fallthru
        _
      // Predicated region
      $region49: #{node_forward.1} parent=43 // pred_check
        %p443 = pneg %p134
      $region50: #{node_forward.1} parent=43 // pred_check_branch
        %445 = sbr.rel (%p443) target = $region52
      $region51: #{node_forward.1} parent=43 // pred_region
        %p446 = scmp.lt.s32.totalorder %s17, 1
        %s447 = scalar_select %p446, %s17, 1
        %s448 = smul.addr %s447, 2
        %s449 = smul.addr %s448, 8
        %s450 = scalar_lea.vmem %s4, %s449
      $region52: #{node_forward.1} parent=43 // pred_fallthru
        _
    $region44: #{node_forward.1} parent=5 // pred_fallthru
      _
  $region6: #{node_forward.1} parent=0 // loop_footer
    %s15 = sadd.s32 1, %s11
  $region7: #{node_forward.1} parent=0 // loop_footer_branch
    %10 = sbr.rel target = $region3
  $region8: #{node_forward.1} parent=0 // loop_exit
    _

</llo_original>
